<compile_context>
chip_gen: v5e
topology: v5e:2x2
jax: 0.10.0
libtpu: 0.0.40
codegen_flags: <defaults>
</compile_context>

<pallas_src>
import functools

import jax
import jax.numpy as jnp
from jax import lax
from jax.experimental import pallas as pl
from jax.experimental.pallas import tpu as pltpu


def _round_up(x: int, m: int) -> int:
    return ((x + m - 1) // m) * m


def _linear_kernel(x_ref, w_ref, b_ref, o_ref, acc_ref):
    # x_ref:  (tm, tk)  activation tile
    # w_ref:  (tn, tk)  weight tile (PyTorch layout: (out_features, in_features))
    # b_ref:  (1,  tn)  bias tile
    # o_ref:  (tm, tn)  output tile
    # acc_ref:(tm, tn)  f32 accumulator scratch (persists across the K axis)
    k = pl.program_id(2)

    @pl.when(k == 0)
    def _init():
        acc_ref[...] = jnp.zeros_like(acc_ref)

    # Contract x's last dim against w's last dim -> (tm, tn); MXU ingests the
    # "transposed" operand for free, no wrapper-side weight.T needed.
    acc_ref[...] += lax.dot_general(
        x_ref[...],
        w_ref[...],
        dimension_numbers=(((1,), (1,)), ((), ())),
        preferred_element_type=jnp.float32,
    )

    @pl.when(k == pl.num_programs(2) - 1)
    def _finalize():
        out = acc_ref[...] + b_ref[...].astype(jnp.float32)
        o_ref[...] = out.astype(o_ref.dtype)


def _pick_tiles(M: int, N: int, K: int):
    # Tiles sized for MXU-friendly (multiple-of-128 lane / multiple-of-8 sublane)
    # shapes while staying tiny relative to VMEM on every generation
    # (v5e 16 MiB scoped default, v7x 64 MiB physical).  For small problems the
    # tile collapses to the (padded) full extent.
    tm = min(256, _round_up(M, 8))
    tn = min(256, _round_up(N, 128))
    tk = min(512, _round_up(K, 128))
    return tm, tn, tk


@functools.partial(jax.jit, static_argnames=())
def linear_pallas(x, weight, bias):
    """y = x @ weight.T + bias, matching torch.nn.Linear.

    x:      (..., K)   activations
    weight: (N, K)     (out_features, in_features) -- PyTorch convention
    bias:   (N,)
    """
    N, K = weight.shape
    lead_shape = x.shape[:-1]
    x2d = x.reshape(-1, K)
    M = x2d.shape[0]

    tm, tn, tk = _pick_tiles(M, N, K)
    M_pad = _round_up(M, tm)
    N_pad = _round_up(N, tn)
    K_pad = _round_up(K, tk)

    # Zero-pad to tile multiples (zeros contribute nothing to the contraction).
    if (M_pad, K_pad) != (M, K):
        x2d = jnp.pad(x2d, ((0, M_pad - M), (0, K_pad - K)))
    w = weight
    if (N_pad, K_pad) != (N, K):
        w = jnp.pad(w, ((0, N_pad - N), (0, K_pad - K)))
    b = bias
    if N_pad != N:
        b = jnp.pad(b, (0, N_pad - N))
    b2d = b.reshape(1, N_pad)

    grid = (M_pad // tm, N_pad // tn, K_pad // tk)

    dt_bytes = jnp.dtype(x.dtype).itemsize
    cost = pl.CostEstimate(
        flops=2 * M_pad * N_pad * K_pad,
        transcendentals=0,
        bytes_accessed=(M_pad * K_pad + N_pad * K_pad + N_pad
                        + M_pad * N_pad) * dt_bytes,
    )

    out = pl.pallas_call(
        _linear_kernel,
        out_shape=jax.ShapeDtypeStruct((M_pad, N_pad), x.dtype),
        grid=grid,
        in_specs=[
            pl.BlockSpec((tm, tk), lambda i, j, k: (i, k)),   # x tile
            pl.BlockSpec((tn, tk), lambda i, j, k: (j, k)),   # weight tile
            pl.BlockSpec((1, tn), lambda i, j, k: (0, j)),    # bias tile
        ],
        out_specs=pl.BlockSpec((tm, tn), lambda i, j, k: (i, j)),
        scratch_shapes=[pltpu.VMEM((tm, tn), jnp.float32)],
        compiler_params=pltpu.CompilerParams(
            # M and N tiles are independent -> megacore-shardable on v7x;
            # K is the reduction axis (accumulator carried across it).
            dimension_semantics=("parallel", "parallel", "arbitrary"),
            vmem_limit_bytes=64 * 1024 * 1024,
        ),
        cost_estimate=cost,
    )(x2d, w, b2d)

    out = out[:M, :N]
    return out.reshape(*lead_shape, N)


if __name__ == "__main__":
    # Small shapes consistent with the module: hidden_size=32, batch=2, seq=8
    hidden = 32
    batch, seq = 2, 8

    key = jax.random.PRNGKey(0)
    k_x, k_w, k_b = jax.random.split(key, 3)

    # Deterministic parameter init mimicking nn.Linear's uniform(-1/sqrt(H), 1/sqrt(H))
    bound = 1.0 / (hidden ** 0.5)
    weight = jax.random.uniform(k_w, (hidden, hidden), jnp.float32, -bound, bound)
    bias = jax.random.uniform(k_b, (hidden,), jnp.float32, -bound, bound)

    x = jax.random.normal(k_x, (batch, seq, hidden), jnp.float32)

    y = linear_pallas(x, weight, bias)
    y = jax.block_until_ready(y)

    # Pure-JAX reference check
    y_ref = x @ weight.T + bias
    assert y.shape == (batch, seq, hidden)
    assert jnp.allclose(y, y_ref, atol=1e-5, rtol=1e-5)

    print("KERNEL_OK")
</pallas_src>

<mosaic_0001>
module attributes {stable_mosaic.version = 11 : i64} {
  func.func @_linear_kernel(%arg0: i32, %arg1: i32, %arg2: i32, %arg3: memref<16x128xf32, #tpu.memory_space<vmem>>, %arg4: memref<128x128xf32, #tpu.memory_space<vmem>>, %arg5: memref<1x128xf32, #tpu.memory_space<vmem>>, %arg6: memref<16x128xf32, #tpu.memory_space<vmem>>, %arg7: memref<16x128xf32, #tpu.memory_space<vmem>>) attributes {dimension_semantics = [#tpu.dimension_semantics<parallel>, #tpu.dimension_semantics<parallel>, #tpu.dimension_semantics<arbitrary>], iteration_bounds = array<i64: 1, 1, 1>, scalar_prefetch = 0 : i64, scratch_operands = 1 : i64, tpu.core_type = #tpu.core_type<tc>, window_params = [{transform_indices = @transform_0, window_bounds = array<i64: 16, 128>}, {transform_indices = @transform_1, window_bounds = array<i64: 128, 128>}, {transform_indices = @transform_2, window_bounds = array<i64: 1, 128>}, {transform_indices = @transform_3, window_bounds = array<i64: 16, 128>}]} {
    %c0_i32 = arith.constant 0 : i32
    %0 = arith.cmpi eq, %arg2, %c0_i32 : i32
    %1 = arith.extui %0 : i1 to i32
    %c0_i32_0 = arith.constant 0 : i32
    %2 = arith.cmpi ne, %1, %c0_i32_0 : i32
    scf.if %2 {
      %cst_10 = arith.constant 0.000000e+00 : f32
      %12 = vector.broadcast %cst_10 : f32 to vector<16x128xf32>
      %c0_11 = arith.constant 0 : index
      %c0_12 = arith.constant 0 : index
      %13 = vector.load %arg7[%c0_11, %c0_12] : memref<16x128xf32, #tpu.memory_space<vmem>>, vector<16x128xf32>
      tpu.vector_store %arg7[%c0_11, %c0_12], %12 {strides = array<i32>} : memref<16x128xf32, #tpu.memory_space<vmem>>, vector<16x128xf32>,
    } else {
    }
    %c0 = arith.constant 0 : index
    %c0_1 = arith.constant 0 : index
    %3 = vector.load %arg7[%c0, %c0_1] : memref<16x128xf32, #tpu.memory_space<vmem>>, vector<16x128xf32>
    %c0_2 = arith.constant 0 : index
    %c0_3 = arith.constant 0 : index
    %4 = vector.load %arg3[%c0_2, %c0_3] : memref<16x128xf32, #tpu.memory_space<vmem>>, vector<16x128xf32>
    %c0_4 = arith.constant 0 : index
    %c0_5 = arith.constant 0 : index
    %5 = vector.load %arg4[%c0_4, %c0_5] : memref<128x128xf32, #tpu.memory_space<vmem>>, vector<128x128xf32>
    %cst = arith.constant dense<0.000000e+00> : vector<16x128xf32>
    %6 = tpu.matmul %4, %5, %cst {dimension_numbers = #tpu.dot_dimension_numbers<[1], [1], [0], [0], [0, 0, 1, 0], [], []>} : vector<16x128xf32>, vector<128x128xf32>, vector<16x128xf32> -> vector<16x128xf32>
    %7 = arith.addf %3, %6 : vector<16x128xf32>
    %c0_6 = arith.constant 0 : index
    %c0_7 = arith.constant 0 : index
    %8 = vector.load %arg7[%c0_6, %c0_7] : memref<16x128xf32, #tpu.memory_space<vmem>>, vector<16x128xf32>
    tpu.vector_store %arg7[%c0_6, %c0_7], %7 {strides = array<i32>} : memref<16x128xf32, #tpu.memory_space<vmem>>, vector<16x128xf32>,
    %c0_i32_8 = arith.constant 0 : i32
    %9 = arith.cmpi eq, %arg2, %c0_i32_8 : i32
    %10 = arith.extui %9 : i1 to i32
    %c0_i32_9 = arith.constant 0 : i32
    %11 = arith.cmpi ne, %10, %c0_i32_9 : i32
    scf.if %11 {
      %c0_10 = arith.constant 0 : index
      %c0_11 = arith.constant 0 : index
      %12 = vector.load %arg7[%c0_10, %c0_11] : memref<16x128xf32, #tpu.memory_space<vmem>>, vector<16x128xf32>
      %c0_12 = arith.constant 0 : index
      %c0_13 = arith.constant 0 : index
      %13 = vector.load %arg5[%c0_12, %c0_13] : memref<1x128xf32, #tpu.memory_space<vmem>>, vector<1x128xf32>
      %14 = vector.broadcast %13 : vector<1x128xf32> to vector<16x128xf32>
      %15 = arith.addf %12, %14 : vector<16x128xf32>
      %c0_14 = arith.constant 0 : index
      %c0_15 = arith.constant 0 : index
      %16 = vector.load %arg6[%c0_14, %c0_15] : memref<16x128xf32, #tpu.memory_space<vmem>>, vector<16x128xf32>
      tpu.vector_store %arg6[%c0_14, %c0_15], %15 {strides = array<i32>} : memref<16x128xf32, #tpu.memory_space<vmem>>, vector<16x128xf32>,
    } else {
    }
    return
  }
  func.func @transform_0(%arg0: i32, %arg1: i32, %arg2: i32) -> (i32, i32) {
    %c0_i32 = arith.constant 0 : i32
    return %arg0, %arg2 : i32, i32
  }
  func.func @transform_1(%arg0: i32, %arg1: i32, %arg2: i32) -> (i32, i32) {
    %c0_i32 = arith.constant 0 : i32
    return %arg1, %arg2 : i32, i32
  }
  func.func @transform_2(%arg0: i32, %arg1: i32, %arg2: i32) -> (i32, i32) {
    %c0_i32 = arith.constant 0 : i32
    %c0_i32_0 = arith.constant 0 : i32
    return %c0_i32, %arg1 : i32, i32
  }
  func.func @transform_3(%arg0: i32, %arg1: i32, %arg2: i32) -> (i32, i32) {
    %c0_i32 = arith.constant 0 : i32
    return %arg0, %arg1 : i32, i32
  }
}

</mosaic_0001>

<llo_original>
// kernel: linear_pallas.1
$region0: #{linear_pallas.1}
  #allocation0 [shape = 'u32[]', space=smem, size = 0x4, offset = 0x4, fixed_abs, tag = 'smem constant byte address 0x4 - core index']
  #allocation1 [shape = 'u32[72,128]{1,0:T(1,128)}', space=vmem, size = 0x9000, scoped, tag = 'internal scratch']
  #allocation2 [shape = 'f32[16,128]{1,0:T(8,128)}', space=vmem, size = 0x2000, scoped, tag = 'scratch operand']
  %s0 = inlined_call_operand.vmem [shape: f32[16,128], index: 0, kind: input, shape index: {}]
  %s1 = inlined_call_operand.vmem [shape: f32[128,128], index: 1, kind: input, shape index: {}]
  %s2 = inlined_call_operand.vmem [shape: f32[1,128], index: 2, kind: input, shape index: {}]
  %s3 = inlined_call_operand.vmem [shape: f32[16,128], index: 3, kind: output, shape index: {}]
  %s4 = sld [smem:[#allocation0]]
  $region30: #{linear_pallas.1} parent=0
    _
  %s6 = ssub.s32 1, %s4
  %s7 = scalar_select 0, %s6, %s4
  // Predicated region
  $region2: #{linear_pallas.1} parent=0 // pred_check
    _
  $region3: #{linear_pallas.1} parent=0 // pred_check_branch
    %9 = sbr.rel (0) target = $region5
  $region4: #{linear_pallas.1} parent=0 // pred_region
    _
  $region5: #{linear_pallas.1} parent=0 // pred_fallthru
    _
  // Predicated region
  $region6: #{linear_pallas.1} parent=0 // pred_check
    _
  $region7: #{linear_pallas.1} parent=0 // pred_check_branch
    %11 = sbr.rel (0) target = $region9
  $region8: #{linear_pallas.1} parent=0 // pred_region
    _
  $region9: #{linear_pallas.1} parent=0 // pred_fallthru
    _
  // Predicated region
  $region10: #{linear_pallas.1} parent=0 // pred_check
    _
  $region11: #{linear_pallas.1} parent=0 // pred_check_branch
    %13 = sbr.rel (0) target = $region13
  $region12: #{linear_pallas.1} parent=0 // pred_region
    _
  $region13: #{linear_pallas.1} parent=0 // pred_fallthru
    _
  %p14 = scmp.eq.s32.totalorder 0, 0
  // Predicated region
  $region14: #{linear_pallas.1} parent=0 // pred_check
    %p15 = pneg %p14
  $region15: #{linear_pallas.1} parent=0 // pred_check_branch
    %17 = sbr.rel (%p15) target = $region17
  $region16: #{linear_pallas.1} parent=0 // pred_region
    %18 = vst [vmem:[#allocation2] sm:$0xff] 0.0
    %19 = vst [vmem:[#allocation2 + $0x8] sm:$0xff] 0.0
  $region17: #{linear_pallas.1} parent=0 // pred_fallthru
    _
  %v20 = vld [vmem:[#allocation2] sm:$0xff]
  %v21 = vld [vmem:[#allocation2 + $0x8] sm:$0xff]
  %v22 = vld [vmem:[%s0] sm:$0xff]
  %v23 = vld [vmem:[%s0 + $0x8] sm:$0xff]
  %v24 = vld [vmem:[%s1] sm:$0xff]
  %v25 = vld [vmem:[%s1 + $0x8] sm:$0xff]
  %v26 = vld [vmem:[%s1 + $0x10] sm:$0xff]
  %v27 = vld [vmem:[%s1 + $0x18] sm:$0xff]
  %v28 = vld [vmem:[%s1 + $0x20] sm:$0xff]
  %v29 = vld [vmem:[%s1 + $0x28] sm:$0xff]
  %v30 = vld [vmem:[%s1 + $0x30] sm:$0xff]
  %v31 = vld [vmem:[%s1 + $0x38] sm:$0xff]
  %v32 = vld [vmem:[%s1 + $0x40] sm:$0xff]
  %v33 = vld [vmem:[%s1 + $0x48] sm:$0xff]
  %v34 = vld [vmem:[%s1 + $0x50] sm:$0xff]
  %v35 = vld [vmem:[%s1 + $0x58] sm:$0xff]
  %v36 = vld [vmem:[%s1 + $0x60] sm:$0xff]
  %v37 = vld [vmem:[%s1 + $0x68] sm:$0xff]
  %v38 = vld [vmem:[%s1 + $0x70] sm:$0xff]
  %v39 = vld [vmem:[%s1 + $0x78] sm:$0xff]
  %40 = vmatpush.xpose.msra.mxu0 %v39
  %41 = vmatpush.xpose.msra.mxu0 %v38
  %42 = vmatpush.xpose.msra.mxu0 %v37
  %43 = vmatpush.xpose.msra.mxu0 %v36
  %44 = vmatpush.xpose.msra.mxu0 %v35
  %45 = vmatpush.xpose.msra.mxu0 %v34
  %46 = vmatpush.xpose.msra.mxu0 %v33
  %47 = vmatpush.xpose.msra.mxu0 %v32
  %48 = vmatpush.xpose.msra.mxu0 %v31
  %49 = vmatpush.xpose.msra.mxu0 %v30
  %50 = vmatpush.xpose.msra.mxu0 %v29
  %51 = vmatpush.xpose.msra.mxu0 %v28
  %52 = vmatpush.xpose.msra.mxu0 %v27
  %53 = vmatpush.xpose.msra.mxu0 %v26
  %54 = vmatpush.xpose.msra.mxu0 %v25
  %55 = vmatpush.xpose.msra.mxu0 %v24
  %56 = vmatmul.f32.gmra.mxu0 %v22
  %v57 = vpop.f32.mrf.mxu0
  %v58 = vadd.f32 0.0, %v57
  %59 = vmatmul.f32.gmra.mxu0 %v23
  %v60 = vpop.f32.mrf.mxu0
  %v61 = vadd.f32 0.0, %v60
  %62 = vdwg.mxu0
  %v63 = vadd.f32 %v20, %v58
  %v64 = vadd.f32 %v21, %v61
  %65 = vst [vmem:[#allocation2] sm:$0xff] %v63
  %66 = vst [vmem:[#allocation2 + $0x8] sm:$0xff] %v64
  // Predicated region
  $region18: #{linear_pallas.1} parent=0 // pred_check
    %p67 = pneg %p14
  $region19: #{linear_pallas.1} parent=0 // pred_check_branch
    %69 = sbr.rel (%p67) target = $region21
  $region20: #{linear_pallas.1} parent=0 // pred_region
    %v70 = vld [vmem:[#allocation2] sm:$0xff]
    %v71 = vld [vmem:[#allocation2 + $0x8] sm:$0xff]
    %v72 = vld [vmem:[%s2] sm:$0x1]
    %v74 = vperm.slane %v72, 0
    %v76 = vadd.f32 %v70, %v74
    %v77 = vadd.f32 %v71, %v74
    %78 = vst [vmem:[%s3] sm:$0xff] %v76
    %79 = vst [vmem:[%s3 + $0x8] sm:$0xff] %v77
  $region21: #{linear_pallas.1} parent=0 // pred_fallthru
    _
  // Predicated region
  $region22: #{linear_pallas.1} parent=0 // pred_check
    _
  $region23: #{linear_pallas.1} parent=0 // pred_check_branch
    %81 = sbr.rel (0) target = $region25
  $region24: #{linear_pallas.1} parent=0 // pred_region
    _
  $region25: #{linear_pallas.1} parent=0 // pred_fallthru
    _
  // Predicated region
  $region26: #{linear_pallas.1} parent=0 // pred_check
    _
  $region27: #{linear_pallas.1} parent=0 // pred_check_branch
    %83 = sbr.rel (0) target = $region29
  $region28: #{linear_pallas.1} parent=0 // pred_region
    _
  $region29: #{linear_pallas.1} parent=0 // pred_fallthru
    _

</llo_original>
